<compile_context>
chip_gen: v6e
topology: v6e:2x2x1
jax: 0.10.0
libtpu: 0.0.40
codegen_flags: <defaults>
</compile_context>

<pallas_src>
import functools

import jax
import jax.numpy as jnp
from jax.experimental import pallas as pl
from jax.experimental.pallas import tpu as pltpu


# ----------------------------------------------------------------------------
# Helpers
# ----------------------------------------------------------------------------
def _pick_batch_tile(N, HW, C, budget_bytes=2 * 1024 * 1024):
    """Samples per GroupNorm grid step.

    Kept small (~2 MiB of bf16 input per block; f32 temporaries inside the
    kernel are a few times that) so the footprint stays well inside v7x's
    64 MiB VMEM, and capped at N//2 so the 'parallel' grid axis has >= 2 steps
    whenever N >= 2 (v7x megacore).
    """
    per_sample = HW * C * 2
    bn = max(1, min(N, budget_bytes // max(per_sample, 1)))
    bn = min(bn, max(1, N // 2))
    while N % bn:
        bn -= 1
    return bn


# ----------------------------------------------------------------------------
# GroupNorm + ReLU
# ----------------------------------------------------------------------------
def _gn_relu_kernel(x_ref, p_ref, g_ref, b_ref, o_ref, *, eps):
    # x block: (bn, H*W, C).  Per-sample, per-group statistics (PyTorch GN,
    # biased variance).  The channel-group reduction is a tiny (C, C)
    # group-averaging matmul so channels never leave the lane axis.
    x = x_ref[...].astype(jnp.float32)                        # (bn, HW, C)
    P = p_ref[...]                                            # (C, C)
    mean = jnp.dot(jnp.sum(x, axis=1), P,
                   preferred_element_type=jnp.float32)        # (bn, C)
    xc = x - mean[:, None, :]
    var = jnp.dot(jnp.sum(xc * xc, axis=1), P,                # two-pass variance
                  preferred_element_type=jnp.float32)
    inv = jax.lax.rsqrt(var + eps)
    y = xc * inv[:, None, :] * g_ref[...] + b_ref[...]
    o_ref[...] = jnp.maximum(y, 0.0).astype(o_ref.dtype)


def groupnorm_relu(x, gamma, beta, groups, eps=1e-5, out_dtype=jnp.bfloat16):
    """x: (N,H,W,C) -> GroupNorm(groups) + affine + ReLU (channels on lanes)."""
    # TODO(synk): optionally fuse GN+ReLU as a conv prologue (stats kernel +
    # scalar-prefetched mean/rsqrt) to save one activation HBM round trip.
    N, H, W, C = x.shape
    HW = H * W
    Cg = C // groups
    xr = x.reshape(N, HW, C)                                   # free reshape

    gid = jnp.arange(C) // Cg
    P = (gid[:, None] == gid[None, :]).astype(jnp.float32) / float(HW * Cg)
    g = gamma.astype(jnp.float32).reshape(1, 1, C)
    b = beta.astype(jnp.float32).reshape(1, 1, C)

    bn = _pick_batch_tile(N, HW, C)
    out = pl.pallas_call(
        functools.partial(_gn_relu_kernel, eps=eps),
        out_shape=jax.ShapeDtypeStruct((N, HW, C), out_dtype),
        grid=(N // bn,),
        in_specs=[
            pl.BlockSpec((bn, HW, C), lambda i: (i, 0, 0)),
            pl.BlockSpec((C, C), lambda i: (0, 0)),
            pl.BlockSpec((1, 1, C), lambda i: (0, 0, 0)),
            pl.BlockSpec((1, 1, C), lambda i: (0, 0, 0)),
        ],
        out_specs=pl.BlockSpec((bn, HW, C), lambda i: (i, 0, 0)),
        compiler_params=pltpu.CompilerParams(
            dimension_semantics=("parallel",),
            vmem_limit_bytes=32 * 1024 * 1024),
    )(xr, P, g, b)
    return out.reshape(N, H, W, C)


# ----------------------------------------------------------------------------
# 3x3 conv (padding=1, no conv bias) with fused epilogues
# ----------------------------------------------------------------------------
def _conv3x3_kernel(x_ref, w_ref, *rest, stride, Ho, Wo, Hq, has_bias, has_res):
    """One sample per grid step.

    x_ref : (s*s*Hq, Wq, Cin) bf16 -- zero-padded, polyphase-split input slab.
    w_ref : (9, Cin, Cout)    bf16 -- full filter bank, VMEM-resident
                                      (constant block index across the grid).
    bias  : (1, Cout) f32 (optional per-sample time-embedding bias).
    res   : (Ho*Wo, Cout) f32 (optional residual).
    out   : (Ho*Wo, Cout).
    acc   : (Ho*Wo, Cout) f32 VMEM scratch.

    out[ho, wo] = sum_{ky,kx} xpad[ho*s + ky, wo*s + kx] @ w[ky, kx]; each tap
    reads a shifted window straight out of the resident slab, so there is no
    im2col expansion in HBM.
    """
    refs = list(rest)
    bias_ref = refs.pop(0) if has_bias else None
    res_ref = refs.pop(0) if has_res else None
    o_ref, acc_ref = refs

    s = stride
    Cin = x_ref.shape[-1]
    M = Ho * Wo
    for t in range(9):
        ky, kx = divmod(t, 3)
        p = (ky % s) * s + (kx % s)            # polyphase slab for this tap
        oy, ox = ky // s, kx // s              # window offset inside the slab
        a = x_ref[pl.ds(p * Hq + oy, Ho), pl.ds(ox, Wo), :]
        # (Ho, Wo, Cin) -> (M, Cin): trivial relayout when Wo % 8 == 0, which
        # holds for CIFAR-scale WideResnet spatial sizes.
        a = a.reshape(M, Cin)
        contrib = jnp.dot(a, w_ref[t], preferred_element_type=jnp.float32)
        if t == 0:
            acc_ref[...] = contrib
        else:
            acc_ref[...] += contrib

    y = acc_ref[...]
    if has_bias:
        y = y + bias_ref[...]                  # (1, Cout) broadcast
    if has_res:
        y = y + res_ref[...]
    o_ref[...] = y.astype(o_ref.dtype)


def conv3x3(x, w, stride, bias_nc=None, residual=None, out_dtype=jnp.bfloat16,
            vmem_limit_bytes=64 * 1024 * 1024):
    """3x3 conv, padding=1, stride in {1,2}, no conv bias.

    x: (N,H,W,Cin), w: (3,3,Cin,Cout) HWIO.  Optional fused epilogues:
    per-sample bias (N,Cout) and/or residual (N,Ho,Wo,Cout).

    One whole sample (all output rows, full Cout) per grid step keeps the
    weight bank VMEM-resident and streams activations exactly once; fine for
    CIFAR-scale WRN shapes (<= ~15 MiB/step even at 640 channels, 32x32).
    # TODO(synk): tile output rows (with halo) and/or Cout for larger images
    # or channel counts that do not fit a single VMEM block; consider fp8
    # weight storage on v7x.
    """
    N, H, W, Cin = x.shape
    assert w.shape[:3] == (3, 3, Cin), w.shape
    Cout = w.shape[-1]
    s = int(stride)
    assert s in (1, 2), "only stride 1 or 2 supported"
    Ho = (H - 1) // s + 1
    Wo = (W - 1) // s + 1
    Hq = Ho + 2 // s                            # rows per polyphase slab
    Wq = Wo + 2 // s                            # cols per polyphase slab
    M = Ho * Wo
    P = s * s

    # Zero pad (1 on top/left; bottom/right so every phase has Hq x Wq rows).
    xp = jnp.pad(x.astype(jnp.bfloat16),
                 ((0, 0), (1, s * Hq - H - 1), (1, s * Wq - W - 1), (0, 0)))
    if s == 1:
        xph = xp                                              # (N, Hq, Wq, Cin)
    else:
        # xph[n, (py*s+px)*Hq + i, j, c] = xp[n, i*s + py, j*s + px, c]
        xph = xp.reshape(N, Hq, s, Wq, s, Cin).transpose(0, 2, 4, 1, 3, 5)
        xph = xph.reshape(N, P * Hq, Wq, Cin)
    w9 = w.astype(jnp.bfloat16).reshape(9, Cin, Cout)

    has_bias = bias_nc is not None
    has_res = residual is not None

    args = [xph, w9]
    in_specs = [
        pl.BlockSpec((None, P * Hq, Wq, Cin), lambda n: (n, 0, 0, 0)),
        pl.BlockSpec((9, Cin, Cout), lambda n: (0, 0, 0)),    # resident weights
    ]
    if has_bias:
        args.append(bias_nc.astype(jnp.float32).reshape(N, 1, Cout))
        in_specs.append(pl.BlockSpec((None, 1, Cout), lambda n: (n, 0, 0)))
    if has_res:
        args.append(residual.astype(jnp.float32).reshape(N, M, Cout))
        in_specs.append(pl.BlockSpec((None, M, Cout), lambda n: (n, 0, 0)))

    out = pl.pallas_call(
        functools.partial(_conv3x3_kernel, stride=s, Ho=Ho, Wo=Wo, Hq=Hq,
                          has_bias=has_bias, has_res=has_res),
        out_shape=jax.ShapeDtypeStruct((N, M, Cout), out_dtype),
        grid=(N,),
        in_specs=in_specs,
        out_specs=pl.BlockSpec((None, M, Cout), lambda n: (n, 0, 0)),
        scratch_shapes=[pltpu.VMEM((M, Cout), jnp.float32)],
        compiler_params=pltpu.CompilerParams(
            dimension_semantics=("parallel",),
            vmem_limit_bytes=vmem_limit_bytes),
    )(*args)
    return out.reshape(N, Ho, Wo, Cout)


# ----------------------------------------------------------------------------
# Time embedding (tiny: left to XLA per perf review) and residual prep
# ----------------------------------------------------------------------------
def time_embed(temb, wt, bt):
    """SiLU + Linear; (N,T) -> (N,planes) in f32."""
    t = temb.astype(jnp.float32)
    return (t * jax.nn.sigmoid(t)) @ wt.astype(jnp.float32) + bt.astype(jnp.float32)


def _prep_residual(orig_x, block_x, out_channels):
    """Shortcut prep matching _output_add: avg-pool + zero channel pad (glue)."""
    N, H, W, Co = orig_x.shape
    _, Ho, Wo, _ = block_x.shape
    if Co != out_channels:
        s = H // Ho
        pooled = orig_x.astype(jnp.float32).reshape(N, Ho, s, Wo, s, Co).mean(axis=(2, 4))
        return jnp.pad(pooled, ((0, 0), (0, 0), (0, 0), (0, out_channels - Co)))
    # PyTorch _output_add only pools when channels differ; same-channel blocks
    # must have matching spatial dims (stride == 1).
    assert (H, W) == (Ho, Wo), "stride>1 with unchanged channels is unsupported"
    return orig_x


# ----------------------------------------------------------------------------
# Model: WideResnetBlock / WideResnetGroup forward
# ----------------------------------------------------------------------------
def wide_resnet_block(x, temb, p, stride, activate_before_residual):
    """x: NHWC (bf16)."""
    if activate_before_residual:
        x = groupnorm_relu(x, p["g0"], p["b0"], p["groups0"])
        orig_x = x
        block_x = x
    else:
        orig_x = x
        block_x = groupnorm_relu(x, p["g0"], p["b0"], p["groups0"])
    temb_vec = time_embed(temb, p["wt"], p["bt"])                   # (N, planes)
    block_x = conv3x3(block_x, p["w1"], stride, bias_nc=temb_vec)   # fused bias
    block_x = groupnorm_relu(block_x, p["g2"], p["b2"], p["groups2"])
    res = _prep_residual(orig_x, block_x, p["w2"].shape[-1])
    return conv3x3(block_x, p["w2"], 1, residual=res)               # fused residual


def wide_resnet_group(x_nchw, temb, params_list, stride, activate_before_residual):
    """Public interface is NCHW (PyTorch convention)."""
    x = jnp.transpose(x_nchw.astype(jnp.bfloat16), (0, 2, 3, 1))    # -> NHWC
    for i, p in enumerate(params_list):
        s = stride if i == 0 else 1
        abr = activate_before_residual if i == 0 else False
        x = wide_resnet_block(x, temb, p, s, abr)
    return jnp.transpose(x, (0, 3, 1, 2)).astype(jnp.float32)       # -> NCHW, f32


# ----------------------------------------------------------------------------
# Deterministic parameter init (synthetic; matches module shapes)
# ----------------------------------------------------------------------------
def init_block_params(key, in_planes, planes, time_channels):
    k1, k2, k3, k4 = jax.random.split(key, 4)
    return dict(
        groups0=min(in_planes // 4, 32),
        g0=jnp.ones((in_planes,), jnp.float32),             # GroupNorm default gamma
        b0=jnp.zeros((in_planes,), jnp.float32),             # GroupNorm default beta
        w1=0.1 * jax.random.normal(k1, (3, 3, in_planes, planes), jnp.float32),
        groups2=min(planes // 4, 32),
        g2=jnp.ones((planes,), jnp.float32),
        b2=jnp.zeros((planes,), jnp.float32),
        w2=0.1 * jax.random.normal(k2, (3, 3, planes, planes), jnp.float32),
        wt=0.1 * jax.random.normal(k3, (time_channels, planes), jnp.float32),
        bt=0.1 * jax.random.normal(k4, (1, planes), jnp.float32),
    )


if __name__ == "__main__":
    key = jax.random.PRNGKey(0)
    kx, kt, kp1, kp2 = jax.random.split(key, 4)

    # Small shapes consistent with the module: NCHW input + time embedding.
    N, in_planes, Hs, Ws = 2, 4, 16, 16
    planes, time_channels = 8, 16
    blocks_per_group, stride, activate_before_residual = 2, 2, True

    x = jax.random.normal(kx, (N, in_planes, Hs, Ws), jnp.float32)
    temb = jax.random.normal(kt, (N, time_channels), jnp.float32)

    params = [
        init_block_params(kp1, in_planes, planes, time_channels),
        init_block_params(kp2, planes, planes, time_channels),
    ]
    assert len(params) == blocks_per_group

    out = wide_resnet_group(x, temb, params, stride, activate_before_residual)
    out = jax.block_until_ready(out)
    assert out.shape == (N, planes, Hs // stride, Ws // stride), out.shape
    assert bool(jnp.all(jnp.isfinite(out)))
    print("KERNEL_OK")
</pallas_src>

<mosaic_0001>
module attributes {stable_mosaic.version = 11 : i64} {
  func.func @_gn_relu_kernel(%arg0: i32, %arg1: memref<1x256x4xbf16, #tpu.memory_space<vmem>>, %arg2: memref<4x4xf32, #tpu.memory_space<vmem>>, %arg3: memref<1x1x4xf32, #tpu.memory_space<vmem>>, %arg4: memref<1x1x4xf32, #tpu.memory_space<vmem>>, %arg5: memref<1x256x4xbf16, #tpu.memory_space<vmem>>) attributes {dimension_semantics = [#tpu.dimension_semantics<parallel>], iteration_bounds = array<i64: 2>, scalar_prefetch = 0 : i64, scratch_operands = 0 : i64, tpu.core_type = #tpu.core_type<tc>, window_params = [{transform_indices = @transform_0, window_bounds = array<i64: 1, 256, 4>}, {pipeline_mode = #tpu.pipeline_mode<synchronous>, transform_indices = @transform_1, window_bounds = array<i64: 4, 4>}, {pipeline_mode = #tpu.pipeline_mode<synchronous>, transform_indices = @transform_2, window_bounds = array<i64: 1, 1, 4>}, {pipeline_mode = #tpu.pipeline_mode<synchronous>, transform_indices = @transform_3, window_bounds = array<i64: 1, 1, 4>}, {transform_indices = @transform_4, window_bounds = array<i64: 1, 256, 4>}]} {
    %c0 = arith.constant 0 : index
    %c0_0 = arith.constant 0 : index
    %c0_1 = arith.constant 0 : index
    %0 = vector.load %arg1[%c0, %c0_0, %c0_1] : memref<1x256x4xbf16, #tpu.memory_space<vmem>>, vector<1x256x4xbf16>
    %1 = arith.extf %0 : vector<1x256x4xbf16> to vector<1x256x4xf32>
    %c0_2 = arith.constant 0 : index
    %c0_3 = arith.constant 0 : index
    %2 = vector.load %arg2[%c0_2, %c0_3] : memref<4x4xf32, #tpu.memory_space<vmem>>, vector<4x4xf32>
    %cst = arith.constant dense<0.000000e+00> : vector<1x4xf32>
    %3 = vector.multi_reduction <add>, %1, %cst [1] : vector<1x256x4xf32> to vector<1x4xf32>
    %cst_4 = arith.constant dense<0.000000e+00> : vector<1x4xf32>
    %4 = tpu.matmul %3, %2, %cst_4 {dimension_numbers = #tpu.dot_dimension_numbers<[1], [0], [0], [1], [0, 0, 1, 1], [], []>} : vector<1x4xf32>, vector<4x4xf32>, vector<1x4xf32> -> vector<1x4xf32>
    %5 = vector.shape_cast %4 : vector<1x4xf32> to vector<1x1x4xf32>
    %6 = vector.broadcast %5 : vector<1x1x4xf32> to vector<1x256x4xf32>
    %7 = arith.subf %1, %6 : vector<1x256x4xf32>
    %8 = arith.mulf %7, %7 : vector<1x256x4xf32>
    %cst_5 = arith.constant dense<0.000000e+00> : vector<1x4xf32>
    %9 = vector.multi_reduction <add>, %8, %cst_5 [1] : vector<1x256x4xf32> to vector<1x4xf32>
    %cst_6 = arith.constant dense<0.000000e+00> : vector<1x4xf32>
    %10 = tpu.matmul %9, %2, %cst_6 {dimension_numbers = #tpu.dot_dimension_numbers<[1], [0], [0], [1], [0, 0, 1, 1], [], []>} : vector<1x4xf32>, vector<4x4xf32>, vector<1x4xf32> -> vector<1x4xf32>
    %cst_7 = arith.constant 9.99999974E-6 : f32
    %11 = vector.broadcast %cst_7 : f32 to vector<1x4xf32>
    %12 = arith.addf %10, %11 : vector<1x4xf32>
    %13 = math.rsqrt %12 : vector<1x4xf32>
    %14 = vector.shape_cast %13 : vector<1x4xf32> to vector<1x1x4xf32>
    %15 = vector.broadcast %14 : vector<1x1x4xf32> to vector<1x256x4xf32>
    %16 = arith.mulf %7, %15 : vector<1x256x4xf32>
    %c0_8 = arith.constant 0 : index
    %c0_9 = arith.constant 0 : index
    %c0_10 = arith.constant 0 : index
    %17 = vector.load %arg3[%c0_8, %c0_9, %c0_10] : memref<1x1x4xf32, #tpu.memory_space<vmem>>, vector<1x1x4xf32>
    %18 = vector.broadcast %17 : vector<1x1x4xf32> to vector<1x256x4xf32>
    %19 = arith.mulf %16, %18 : vector<1x256x4xf32>
    %c0_11 = arith.constant 0 : index
    %c0_12 = arith.constant 0 : index
    %c0_13 = arith.constant 0 : index
    %20 = vector.load %arg4[%c0_11, %c0_12, %c0_13] : memref<1x1x4xf32, #tpu.memory_space<vmem>>, vector<1x1x4xf32>
    %21 = vector.broadcast %20 : vector<1x1x4xf32> to vector<1x256x4xf32>
    %22 = arith.addf %19, %21 : vector<1x256x4xf32>
    %cst_14 = arith.constant 0.000000e+00 : f32
    %23 = vector.broadcast %cst_14 : f32 to vector<1x256x4xf32>
    %24 = arith.maximumf %22, %23 : vector<1x256x4xf32>
    %25 = arith.truncf %24 : vector<1x256x4xf32> to vector<1x256x4xbf16>
    %c0_15 = arith.constant 0 : index
    %c0_16 = arith.constant 0 : index
    %c0_17 = arith.constant 0 : index
    %26 = vector.load %arg5[%c0_15, %c0_16, %c0_17] : memref<1x256x4xbf16, #tpu.memory_space<vmem>>, vector<1x256x4xbf16>
    tpu.vector_store %arg5[%c0_15, %c0_16, %c0_17], %25 {strides = array<i32>} : memref<1x256x4xbf16, #tpu.memory_space<vmem>>, vector<1x256x4xbf16>,
    return
  }
  func.func @transform_0(%arg0: i32) -> (i32, i32, i32) {
    %c0_i32 = arith.constant 0 : i32
    %c0_i32_0 = arith.constant 0 : i32
    %c0_i32_1 = arith.constant 0 : i32
    return %arg0, %c0_i32, %c0_i32_0 : i32, i32, i32
  }
  func.func @transform_1(%arg0: i32) -> (i32, i32) {
    %c0_i32 = arith.constant 0 : i32
    %c0_i32_0 = arith.constant 0 : i32
    %c0_i32_1 = arith.constant 0 : i32
    return %c0_i32, %c0_i32_0 : i32, i32
  }
  func.func @transform_2(%arg0: i32) -> (i32, i32, i32) {
    %c0_i32 = arith.constant 0 : i32
    %c0_i32_0 = arith.constant 0 : i32
    %c0_i32_1 = arith.constant 0 : i32
    %c0_i32_2 = arith.constant 0 : i32
    return %c0_i32, %c0_i32_0, %c0_i32_1 : i32, i32, i32
  }
  func.func @transform_3(%arg0: i32) -> (i32, i32, i32) {
    %c0_i32 = arith.constant 0 : i32
    %c0_i32_0 = arith.constant 0 : i32
    %c0_i32_1 = arith.constant 0 : i32
    %c0_i32_2 = arith.constant 0 : i32
    return %c0_i32, %c0_i32_0, %c0_i32_1 : i32, i32, i32
  }
  func.func @transform_4(%arg0: i32) -> (i32, i32, i32) {
    %c0_i32 = arith.constant 0 : i32
    %c0_i32_0 = arith.constant 0 : i32
    %c0_i32_1 = arith.constant 0 : i32
    return %arg0, %c0_i32, %c0_i32_0 : i32, i32, i32
  }
}

</mosaic_0001>

<llo_original>
// kernel: tpu_custom_call.1
$region0: #{tpu_custom_call.1}
  #allocation0 [shape = 'u32[]', space=smem, size = 0x4, offset = 0x4, fixed_abs, tag = 'smem constant byte address 0x4 - core index']
  #allocation1 [shape = 'u32[144,128]{1,0:T(1,128)}', space=vmem, size = 0x12000, scoped, tag = 'internal scratch']
  %s0 = inlined_call_operand.vmem [shape: bf16[2,256,4], index: 0, kind: input, shape index: {}]
  %s1 = inlined_call_operand.vmem [shape: f32[4,4], index: 1, kind: input, shape index: {}]
  %s2 = inlined_call_operand.vmem [shape: f32[1,1,4], index: 2, kind: input, shape index: {}]
  %s3 = inlined_call_operand.vmem [shape: f32[1,1,4], index: 3, kind: input, shape index: {}]
  %s4 = inlined_call_operand.vmem [shape: bf16[2,256,4], index: 4, kind: output, shape index: {}]
  %s5 = sld [smem:[#allocation0]]
  $region49: #{tpu_custom_call.1} parent=0
    _
  %s7 = ssub.s32 1, %s5
  %s8 = scalar_select 0, %s7, %s5
  loop: start=0, step=1, limit=4
  $region2: #{tpu_custom_call.1} parent=0 // loop_pre_header
    _
  $region3: #{tpu_custom_call.1} parent=0 // loop_header
    %s10 = sphi 0, %s14
    %p11 = scmp.ge.s32.totalorder %s10, 4
    %s20 = sphi 0, %s22
    %s23 = sphi 0, %s20
    %s24 = sphi 0, %s23
    %s40 = sphi 0, %s24
    %s44 = sphi 0, %s44
    %s46 = sphi 0, %s44
    %s47 = sphi 0, %s46
    %s61 = sphi 0, %s47
    %s65 = sphi 0, %s65
    %s67 = sphi 0, %s65
    %s68 = sphi 0, %s67
    %s82 = sphi 0, %s68
    %s86 = sphi 0, %s86
    %s88 = sphi 0, %s86
    %s89 = sphi 0, %s88
    %s103 = sphi 0, %s89
    %s109 = sphi 0, %s111
    %s112 = sphi 0, %s109
    %s113 = sphi 0, %s112
    %s129 = sphi 0, %s113
  $region4: #{tpu_custom_call.1} parent=0 // loop_header_branch
    %13 = sbr.rel (%p11) target = $region8
  $region5: #{tpu_custom_call.1} parent=0 // loop_body
    %s15 = ssub.s32 %s10, 1
    %s16 = ssub.s32 %s10, 2
    %s17 = sadd.s32 %s10, 1
    %s18 = ssub.s32 %s10, %s17
    %p19 = scmp.eq.s32.totalorder %s18, 0
    %s21 = sadd.s32 %s20, 1
    %s22 = scalar_select %p19, %s20, %s21
    %p25 = pneg %p19
    %p26 = scmp.eq.s32.totalorder %s10, 1
    %p27 = por %p25, %p26
    %p28 = scmp.ne.s32.totalorder %s20, %s23
    %p29 = scmp.eq.s32.totalorder %s10, 0
    %p30 = por %p28, %p29
    %p31 = scmp.ne.s32.totalorder %s20, %s23
    %p32 = scmp.eq.s32.totalorder %s15, 1
    %p33 = por %p31, %p32
    %p34 = scmp.ne.s32.totalorder %s23, %s24
    %p35 = scmp.eq.s32.totalorder %s15, 0
    %p36 = por %p34, %p35
    %p37 = scmp.ne.s32.totalorder %s23, %s24
    %p38 = scmp.eq.s32.totalorder %s16, 1
    %p39 = por %p37, %p38
    %p41 = scmp.ne.s32.totalorder %s24, %s40
    %p42 = scmp.eq.s32.totalorder %s16, 0
    %p43 = por %p41, %p42
    %s45 = sadd.s32 %s44, 1
    %p48 = scmp.eq.s32.totalorder %s10, 1
    %p49 = scmp.ne.s32.totalorder %s44, %s46
    %p50 = scmp.eq.s32.totalorder %s10, 0
    %p51 = por %p49, %p50
    %p52 = scmp.ne.s32.totalorder %s44, %s46
    %p53 = scmp.eq.s32.totalorder %s15, 1
    %p54 = por %p52, %p53
    %p55 = scmp.ne.s32.totalorder %s46, %s47
    %p56 = scmp.eq.s32.totalorder %s15, 0
    %p57 = por %p55, %p56
    %p58 = scmp.ne.s32.totalorder %s46, %s47
    %p59 = scmp.eq.s32.totalorder %s16, 1
    %p60 = por %p58, %p59
    %p62 = scmp.ne.s32.totalorder %s47, %s61
    %p63 = scmp.eq.s32.totalorder %s16, 0
    %p64 = por %p62, %p63
    %s66 = sadd.s32 %s65, 1
    %p69 = scmp.eq.s32.totalorder %s10, 1
    %p70 = scmp.ne.s32.totalorder %s65, %s67
    %p71 = scmp.eq.s32.totalorder %s10, 0
    %p72 = por %p70, %p71
    %p73 = scmp.ne.s32.totalorder %s65, %s67
    %p74 = scmp.eq.s32.totalorder %s15, 1
    %p75 = por %p73, %p74
    %p76 = scmp.ne.s32.totalorder %s67, %s68
    %p77 = scmp.eq.s32.totalorder %s15, 0
    %p78 = por %p76, %p77
    %p79 = scmp.ne.s32.totalorder %s67, %s68
    %p80 = scmp.eq.s32.totalorder %s16, 1
    %p81 = por %p79, %p80
    %p83 = scmp.ne.s32.totalorder %s68, %s82
    %p84 = scmp.eq.s32.totalorder %s16, 0
    %p85 = por %p83, %p84
    %s87 = sadd.s32 %s86, 1
    %p90 = scmp.eq.s32.totalorder %s10, 1
    %p91 = scmp.ne.s32.totalorder %s86, %s88
    %p92 = scmp.eq.s32.totalorder %s10, 0
    %p93 = por %p91, %p92
    %p94 = scmp.ne.s32.totalorder %s86, %s88
    %p95 = scmp.eq.s32.totalorder %s15, 1
    %p96 = por %p94, %p95
    %p97 = scmp.ne.s32.totalorder %s88, %s89
    %p98 = scmp.eq.s32.totalorder %s15, 0
    %p99 = por %p97, %p98
    %p100 = scmp.ne.s32.totalorder %s88, %s89
    %p101 = scmp.eq.s32.totalorder %s16, 1
    %p102 = por %p100, %p101
    %p104 = scmp.ne.s32.totalorder %s89, %s103
    %p105 = scmp.eq.s32.totalorder %s16, 0
    %p106 = por %p104, %p105
    %s107 = ssub.s32 %s10, %s17
    %p108 = scmp.eq.s32.totalorder %s107, 0
    %s110 = sadd.s32 %s109, 1
    %s111 = scalar_select %p108, %s109, %s110
    %p114 = pneg %p108
    %p115 = scmp.eq.s32.totalorder %s10, 1
    %p116 = por %p114, %p115
    %p117 = scmp.ne.s32.totalorder %s109, %s112
    %p118 = scmp.eq.s32.totalorder %s10, 0
    %p119 = por %p117, %p118
    %p120 = scmp.ne.s32.totalorder %s109, %s112
    %p121 = scmp.eq.s32.totalorder %s15, 1
    %p122 = por %p120, %p121
    %p123 = scmp.ne.s32.totalorder %s112, %s113
    %p124 = scmp.eq.s32.totalorder %s15, 0
    %p125 = por %p123, %p124
    %p126 = scmp.ne.s32.totalorder %s112, %s113
    %p127 = scmp.eq.s32.totalorder %s16, 1
    %p128 = por %p126, %p127
    %p130 = scmp.ne.s32.totalorder %s113, %s129
    %p131 = scmp.eq.s32.totalorder %s16, 0
    %p132 = por %p130, %p131
    %p133 = scmp.le.s32.totalorder 1, %s10
    %p134 = scmp.lt.s32.totalorder %s10, 3
    %p135 = pnand %p133, %p134
    %p136 = pneg %p135
    // Predicated region
    $region9: #{tpu_custom_call.1} parent=5 // pred_check
      _
    $region10: #{tpu_custom_call.1} parent=5 // pred_check_branch
      %138 = sbr.rel (%p135) target = $region12
    $region11: #{tpu_custom_call.1} parent=5 // pred_region
      %s139 = ssub.s32 %s10, 1
      // Predicated region
      $region13: #{tpu_custom_call.1} parent=11 // pred_check
        %p140 = pneg %p57
      $region14: #{tpu_custom_call.1} parent=11 // pred_check_branch
        %142 = sbr.rel (%p140) target = $region16
      $region15: #{tpu_custom_call.1} parent=11 // pred_region
        _
      $region16: #{tpu_custom_call.1} parent=11 // pred_fallthru
        _
      // Predicated region
      $region17: #{tpu_custom_call.1} parent=11 // pred_check
        %p143 = pneg %p78
      $region18: #{tpu_custom_call.1} parent=11 // pred_check_branch
        %145 = sbr.rel (%p143) target = $region20
      $region19: #{tpu_custom_call.1} parent=11 // pred_region
        _
      $region20: #{tpu_custom_call.1} parent=11 // pred_fallthru
        _
      // Predicated region
      $region21: #{tpu_custom_call.1} parent=11 // pred_check
        %p146 = pneg %p99
      $region22: #{tpu_custom_call.1} parent=11 // pred_check_branch
        %148 = sbr.rel (%p146) target = $region24
      $region23: #{tpu_custom_call.1} parent=11 // pred_region
        _
      $region24: #{tpu_custom_call.1} parent=11 // pred_fallthru
        _
    $region12: #{tpu_custom_call.1} parent=5 // pred_fallthru
      _
    %p149 = scmp.lt.s32.totalorder %s10, 2
    // Predicated region
    $region25: #{tpu_custom_call.1} parent=5 // pred_check
      %p150 = pneg %p149
    $region26: #{tpu_custom_call.1} parent=5 // pred_check_branch
      %152 = sbr.rel (%p150) target = $region28
    $region27: #{tpu_custom_call.1} parent=5 // pred_region
      // Predicated region
      $region29: #{tpu_custom_call.1} parent=27 // pred_check
        %p153 = pneg %p30
      $region30: #{tpu_custom_call.1} parent=27 // pred_check_branch
        %155 = sbr.rel (%p153) target = $region32
      $region31: #{tpu_custom_call.1} parent=27 // pred_region
        %p156 = scmp.lt.s32.totalorder %s10, 1
        %s157 = scalar_select %p156, %s10, 1
        %s158 = smul.addr %s157, 32
        %s159 = smul.addr %s158, 4
        %s160 = scalar_lea.vmem %s0, %s159
      $region32: #{tpu_custom_call.1} parent=27 // pred_fallthru
        _
    $region28: #{tpu_custom_call.1} parent=5 // pred_fallthru
      _
    %p161 = scmp.le.s32.totalorder 1, %s10
    %p162 = scmp.lt.s32.totalorder %s10, 3
    %p163 = pnand %p161, %p162
    %p164 = pneg %p163
    // Predicated region
    $region33: #{tpu_custom_call.1} parent=5 // pred_check
      _
    $region34: #{tpu_custom_call.1} parent=5 // pred_check_branch
      %166 = sbr.rel (%p163) target = $region36
    $region35: #{tpu_custom_call.1} parent=5 // pred_region
      %s167 = ssub.s32 %s10, 1
      %p168 = scmp.lt.s32.totalorder %s15, 1
      %s169 = scalar_select %p168, %s15, 1
      %s170 = smul.addr %s169, 32
      %s171 = smul.addr %s170, 4
      %s172 = scalar_lea.vmem %s0, %s171
      %p173 = pneg %p36
      %p174 = pneg %p33
      %p175 = pneg %p57
      %p176 = pneg %p54
      %p177 = pneg %p78
      %p178 = pneg %p75
      %p179 = pneg %p99
      %p180 = pneg %p96
      %p181 = pneg %p125
      %p182 = pneg %p122
      %p183 = scmp.lt.s32.totalorder %s15, 1
      %s184 = scalar_select %p183, %s15, 1
      %s185 = smul.addr %s184, 32
      %s186 = smul.addr %s185, 4
      %s187 = scalar_lea.vmem %s4, %s186
      %p188 = scmp.lt.s32.totalorder %s15, 1
      %s189 = scalar_select %p188, %s15, 1
      %s190 = smul.addr %s189, 32
      %s191 = smul.addr %s190, 4
      %s192 = scalar_lea.vmem %s0, %s191
      %p193 = scmp.lt.s32.totalorder %s15, 1
      %s194 = scalar_select %p193, %s15, 1
      %s195 = smul.addr %s194, 32
      %s196 = smul.addr %s195, 4
      %s197 = scalar_lea.vmem %s4, %s196
      %v198 = vld [vmem:[%s192] sm:$0xf]
      %v199 = vld [vmem:[%s192 + $0x4] sm:$0xf]
      %v200 = vld [vmem:[%s192 + $0x8] sm:$0xf]
      %v201 = vld [vmem:[%s192 + $0xc] sm:$0xf]
      %v202 = vld [vmem:[%s192 + $0x10] sm:$0xf]
      %v203 = vld [vmem:[%s192 + $0x14] sm:$0xf]
      %v204 = vld [vmem:[%s192 + $0x18] sm:$0xf]
      %v205 = vld [vmem:[%s192 + $0x1c] sm:$0xf]
      %v206 = vld [vmem:[%s192 + $0x20] sm:$0xf]
      %v207 = vld [vmem:[%s192 + $0x24] sm:$0xf]
      %v208 = vld [vmem:[%s192 + $0x28] sm:$0xf]
      %v209 = vld [vmem:[%s192 + $0x2c] sm:$0xf]
      %v210 = vld [vmem:[%s192 + $0x30] sm:$0xf]
      %v211 = vld [vmem:[%s192 + $0x34] sm:$0xf]
      %v212 = vld [vmem:[%s192 + $0x38] sm:$0xf]
      %v213 = vld [vmem:[%s192 + $0x3c] sm:$0xf]
      %v214 = vld [vmem:[%s192 + $0x40] sm:$0xf]
      %v215 = vld [vmem:[%s192 + $0x44] sm:$0xf]
      %v216 = vld [vmem:[%s192 + $0x48] sm:$0xf]
      %v217 = vld [vmem:[%s192 + $0x4c] sm:$0xf]
      %v218 = vld [vmem:[%s192 + $0x50] sm:$0xf]
      %v219 = vld [vmem:[%s192 + $0x54] sm:$0xf]
      %v220 = vld [vmem:[%s192 + $0x58] sm:$0xf]
      %v221 = vld [vmem:[%s192 + $0x5c] sm:$0xf]
      %v222 = vld [vmem:[%s192 + $0x60] sm:$0xf]
      %v223 = vld [vmem:[%s192 + $0x64] sm:$0xf]
      %v224 = vld [vmem:[%s192 + $0x68] sm:$0xf]
      %v225 = vld [vmem:[%s192 + $0x6c] sm:$0xf]
      %v226 = vld [vmem:[%s192 + $0x70] sm:$0xf]
      %v227 = vld [vmem:[%s192 + $0x74] sm:$0xf]
      %v228 = vld [vmem:[%s192 + $0x78] sm:$0xf]
      %v229 = vld [vmem:[%s192 + $0x7c] sm:$0xf]
      %v230 = vunpack.c.l.bf16 %v198
      %v231 = vunpack.c.l.bf16 %v199
      %v232 = vunpack.c.l.bf16 %v200
      %v233 = vunpack.c.l.bf16 %v201
      %v234 = vunpack.c.l.bf16 %v202
      %v235 = vunpack.c.l.bf16 %v203
      %v236 = vunpack.c.l.bf16 %v204
      %v237 = vunpack.c.l.bf16 %v205
      %v238 = vunpack.c.l.bf16 %v206
      %v239 = vunpack.c.l.bf16 %v207
      %v240 = vunpack.c.l.bf16 %v208
      %v241 = vunpack.c.l.bf16 %v209
      %v242 = vunpack.c.l.bf16 %v210
      %v243 = vunpack.c.l.bf16 %v211
      %v244 = vunpack.c.l.bf16 %v212
      %v245 = vunpack.c.l.bf16 %v213
      %v246 = vunpack.c.l.bf16 %v214
      %v247 = vunpack.c.l.bf16 %v215
      %v248 = vunpack.c.l.bf16 %v216
      %v249 = vunpack.c.l.bf16 %v217
      %v250 = vunpack.c.l.bf16 %v218
      %v251 = vunpack.c.l.bf16 %v219
      %v252 = vunpack.c.l.bf16 %v220
      %v253 = vunpack.c.l.bf16 %v221
      %v254 = vunpack.c.l.bf16 %v222
      %v255 = vunpack.c.l.bf16 %v223
      %v256 = vunpack.c.l.bf16 %v224
      %v257 = vunpack.c.l.bf16 %v225
      %v258 = vunpack.c.l.bf16 %v226
      %v259 = vunpack.c.l.bf16 %v227
      %v260 = vunpack.c.l.bf16 %v228
      %v261 = vunpack.c.l.bf16 %v229
      %v262 = vld [vmem:[%s1] sm:$0xf]
      %vm263 = vcmask 31744
      %v264 = vsel %vm263, %v230, 0.0
      %v265 = vsel %vm263, %v231, 0.0
      %v266 = vadd.f32 %v264, %v265
      %v267 = vsel %vm263, %v232, 0.0
      %v268 = vadd.f32 %v266, %v267
      %v269 = vsel %vm263, %v233, 0.0
      %v270 = vadd.f32 %v268, %v269
      %v271 = vsel %vm263, %v234, 0.0
      %v272 = vadd.f32 %v270, %v271
      %v273 = vsel %vm263, %v235, 0.0
      %v274 = vadd.f32 %v272, %v273
      %v275 = vsel %vm263, %v236, 0.0
      %v276 = vadd.f32 %v274, %v275
      %v277 = vsel %vm263, %v237, 0.0
      %v278 = vadd.f32 %v276, %v277
      %v279 = vsel %vm263, %v238, 0.0
      %v280 = vadd.f32 %v278, %v279
      %v281 = vsel %vm263, %v239, 0.0
      %v282 = vadd.f32 %v280, %v281
      %v283 = vsel %vm263, %v240, 0.0
      %v284 = vadd.f32 %v282, %v283
      %v285 = vsel %vm263, %v241, 0.0
      %v286 = vadd.f32 %v284, %v285
      %v287 = vsel %vm263, %v242, 0.0
      %v288 = vadd.f32 %v286, %v287
      %v289 = vsel %vm263, %v243, 0.0
      %v290 = vadd.f32 %v288, %v289
      %v291 = vsel %vm263, %v244, 0.0
      %v292 = vadd.f32 %v290, %v291
      %v293 = vsel %vm263, %v245, 0.0
      %v294 = vadd.f32 %v292, %v293
      %v295 = vsel %vm263, %v246, 0.0
      %v296 = vadd.f32 %v294, %v295
      %v297 = vsel %vm263, %v247, 0.0
      %v298 = vadd.f32 %v296, %v297
      %v299 = vsel %vm263, %v248, 0.0
      %v300 = vadd.f32 %v298, %v299
      %v301 = vsel %vm263, %v249, 0.0
      %v302 = vadd.f32 %v300, %v301
      %v303 = vsel %vm263, %v250, 0.0
      %v304 = vadd.f32 %v302, %v303
      %v305 = vsel %vm263, %v251, 0.0
      %v306 = vadd.f32 %v304, %v305
      %v307 = vsel %vm263, %v252, 0.0
      %v308 = vadd.f32 %v306, %v307
      %v309 = vsel %vm263, %v253, 0.0
      %v310 = vadd.f32 %v308, %v309
      %v311 = vsel %vm263, %v254, 0.0
      %v312 = vadd.f32 %v310, %v311
      %v313 = vsel %vm263, %v255, 0.0
      %v314 = vadd.f32 %v312, %v313
      %v315 = vsel %vm263, %v256, 0.0
      %v316 = vadd.f32 %v314, %v315
      %v317 = vsel %vm263, %v257, 0.0
      %v318 = vadd.f32 %v316, %v317
      %v319 = vsel %vm263, %v258, 0.0
      %v320 = vadd.f32 %v318, %v319
      %v321 = vsel %vm263, %v259, 0.0
      %v322 = vadd.f32 %v320, %v321
      %v323 = vsel %vm263, %v260, 0.0
      %v324 = vadd.f32 %v322, %v323
      %v325 = vsel %vm263, %v261, 0.0
      %v326 = vadd.f32 %v324, %v325
      %v327 = vrot.slane %v326, 4
      %v328 = vadd.f32 %v326, %v327
      %v329 = vrot.slane %v328, 2
      %v330 = vadd.f32 %v328, %v329
      %v331 = vrot.slane %v330, 1
      %v332 = vadd.f32 %v330, %v331
      %v334 = vsel %vm263, %v332, 0
      %vm336 = vcmask 1043456
      %v338 = vsel %vm336, %v262, 0
      %340 = vmatprep.subr.mxu0 0.0
      %341 = vmatpush1.msra.mxu0 0.0
      %342 = vmatprep.subr.mxu0 0.0
      %343 = vmatpush1.msra.mxu0 0.0
      %344 = vmatprep.subr.mxu0 0.0
      %345 = vmatpush1.msra.mxu0 0.0
      %346 = vmatprep.subr.mxu0 0.0
      %347 = vmatpush1.msra.mxu0 0.0
      %348 = vmatprep.subr.mxu0 0.0
      %349 = vmatpush1.msra.mxu0 0.0
      %350 = vmatprep.subr.mxu0 0.0
      %351 = vmatpush1.msra.mxu0 0.0
      %352 = vmatprep.subr.mxu0 0.0
      %353 = vmatpush1.msra.mxu0 0.0
      %354 = vmatprep.subr.mxu0 0.0
      %355 = vmatpush1.msra.mxu0 0.0
      %356 = vmatprep.subr.mxu0 0.0
      %357 = vmatpush1.msra.mxu0 0.0
      %358 = vmatprep.subr.mxu0 0.0
      %359 = vmatpush1.msra.mxu0 0.0
      %360 = vmatprep.subr.mxu0 0.0
      %361 = vmatpush1.msra.mxu0 0.0
      %362 = vmatprep.subr.mxu0 0.0
      %363 = vmatpush1.msra.mxu0 0.0
      %364 = vmatprep.subr.mxu0 0.0
      %365 = vmatpush1.msra.mxu0 0.0
      %366 = vmatprep.subr.mxu0 0.0
      %367 = vmatpush1.msra.mxu0 0.0
      %368 = vmatprep.subr.mxu0 0.0
      %369 = vmatpush1.msra.mxu0 0.0
      %370 = vmatprep.subr.mxu0 0.0
      %371 = vmatpush1.msra.mxu0 %v338
      %372 = vmatprep.subr.mxu0 0.0
      %373 = vmatpush2.msra.mxu0 0.0
      %374 = vmatprep.subr.mxu0 0.0
      %375 = vmatpush2.msra.mxu0 0.0
      %376 = vmatprep.subr.mxu0 0.0
      %377 = vmatpush2.msra.mxu0 0.0
      %378 = vmatprep.subr.mxu0 0.0
      %379 = vmatpush2.msra.mxu0 0.0
      %380 = vmatprep.subr.mxu0 0.0
      %381 = vmatpush2.msra.mxu0 0.0
      %382 = vmatprep.subr.mxu0 0.0
      %383 = vmatpush2.msra.mxu0 0.0
      %384 = vmatprep.subr.mxu0 0.0
      %385 = vmatpush2.msra.mxu0 0.0
      %386 = vmatprep.subr.mxu0 0.0
      %387 = vmatpush2.msra.mxu0 0.0
      %388 = vmatprep.subr.mxu0 0.0
      %389 = vmatpush2.msra.mxu0 0.0
      %390 = vmatprep.subr.mxu0 0.0
      %391 = vmatpush2.msra.mxu0 0.0
      %392 = vmatprep.subr.mxu0 0.0
      %393 = vmatpush2.msra.mxu0 0.0
      %394 = vmatprep.subr.mxu0 0.0
      %395 = vmatpush2.msra.mxu0 0.0
      %396 = vmatprep.subr.mxu0 0.0
      %397 = vmatpush2.msra.mxu0 0.0
      %398 = vmatprep.subr.mxu0 0.0
      %399 = vmatpush2.msra.mxu0 0.0
      %400 = vmatprep.subr.mxu0 0.0
      %401 = vmatpush2.msra.mxu0 0.0
      %402 = vmatprep.subr.mxu0 0.0
      %403 = vmatpush2.msra.mxu0 0.0
      %404 = vmatprep.mubr.f32.mxu0 0.0
      %405 = vmatmul.mubr.f32.gmra.mxu0 %v334
      %v406 = vpop.f32.mrf.mxu0
      %v407 = vadd.f32 0.0, %v406
      %v408 = vpop.f32.mrf.mxu0
      %409 = vdwg.mxu0
      %v410 = vlaneseq
      %v411 = vshrl.u32 %v410, 7
      %v412 = vsub.s32 0, %v411
      %v413 = vrot.slane %v407, %v412
      %v414 = vsub.f32 %v230, %v413
      %v415 = vsub.f32 %v231, %v413
      %v416 = vsub.f32 %v232, %v413
      %v417 = vsub.f32 %v233, %v413
      %v418 = vsub.f32 %v234, %v413
      %v419 = vsub.f32 %v235, %v413
      %v420 = vsub.f32 %v236, %v413
      %v421 = vsub.f32 %v237, %v413
      %v422 = vsub.f32 %v238, %v413
      %v423 = vsub.f32 %v239, %v413
      %v424 = vsub.f32 %v240, %v413
      %v425 = vsub.f32 %v241, %v413
      %v426 = vsub.f32 %v242, %v413
      %v427 = vsub.f32 %v243, %v413
      %v428 = vsub.f32 %v244, %v413
      %v429 = vsub.f32 %v245, %v413
      %v430 = vsub.f32 %v246, %v413
      %v431 = vsub.f32 %v247, %v413
      %v432 = vsub.f32 %v248, %v413
      %v433 = vsub.f32 %v249, %v413
      %v434 = vsub.f32 %v250, %v413
      %v435 = vsub.f32 %v251, %v413
      %v436 = vsub.f32 %v252, %v413
      %v437 = vsub.f32 %v253, %v413
      %v438 = vsub.f32 %v254, %v413
      %v439 = vsub.f32 %v255, %v413
      %v440 = vsub.f32 %v256, %v413
      %v441 = vsub.f32 %v257, %v413
      %v442 = vsub.f32 %v258, %v413
      %v443 = vsub.f32 %v259, %v413
      %v444 = vsub.f32 %v260, %v413
      %v445 = vsub.f32 %v261, %v413
      %v446 = vmul.f32 %v414, %v414
      %v447 = vmul.f32 %v415, %v415
      %v448 = vmul.f32 %v416, %v416
      %v449 = vmul.f32 %v417, %v417
      %v450 = vmul.f32 %v418, %v418
      %v451 = vmul.f32 %v419, %v419
      %v452 = vmul.f32 %v420, %v420
      %v453 = vmul.f32 %v421, %v421
      %v454 = vmul.f32 %v422, %v422
      %v455 = vmul.f32 %v423, %v423
      %v456 = vmul.f32 %v424, %v424
      %v457 = vmul.f32 %v425, %v425
      %v458 = vmul.f32 %v426, %v426
      %v459 = vmul.f32 %v427, %v427
      %v460 = vmul.f32 %v428, %v428
      %v461 = vmul.f32 %v429, %v429
      %v462 = vmul.f32 %v430, %v430
      %v463 = vmul.f32 %v431, %v431
      %v464 = vmul.f32 %v432, %v432
      %v465 = vmul.f32 %v433, %v433
      %v466 = vmul.f32 %v434, %v434
      %v467 = vmul.f32 %v435, %v435
      %v468 = vmul.f32 %v436, %v436
      %v469 = vmul.f32 %v437, %v437
      %v470 = vmul.f32 %v438, %v438
      %v471 = vmul.f32 %v439, %v439
      %v472 = vmul.f32 %v440, %v440
      %v473 = vmul.f32 %v441, %v441
      %v474 = vmul.f32 %v442, %v442
      %v475 = vmul.f32 %v443, %v443
      %v476 = vmul.f32 %v444, %v444
      %v477 = vmul.f32 %v445, %v445
      %v478 = vsel %vm263, %v446, 0.0
      %v479 = vsel %vm263, %v447, 0.0
      %v480 = vadd.f32 %v478, %v479
      %v481 = vsel %vm263, %v448, 0.0
      %v482 = vadd.f32 %v480, %v481
      %v483 = vsel %vm263, %v449, 0.0
      %v484 = vadd.f32 %v482, %v483
      %v485 = vsel %vm263, %v450, 0.0
      %v486 = vadd.f32 %v484, %v485
      %v487 = vsel %vm263, %v451, 0.0
      %v488 = vadd.f32 %v486, %v487
      %v489 = vsel %vm263, %v452, 0.0
      %v490 = vadd.f32 %v488, %v489
      %v491 = vsel %vm263, %v453, 0.0
      %v492 = vadd.f32 %v490, %v491
      %v493 = vsel %vm263, %v454, 0.0
      %v494 = vadd.f32 %v492, %v493
      %v495 = vsel %vm263, %v455, 0.0
      %v496 = vadd.f32 %v494, %v495
      %v497 = vsel %vm263, %v456, 0.0
      %v498 = vadd.f32 %v496, %v497
      %v499 = vsel %vm263, %v457, 0.0
      %v500 = vadd.f32 %v498, %v499
      %v501 = vsel %vm263, %v458, 0.0
      %v502 = vadd.f32 %v500, %v501
      %v503 = vsel %vm263, %v459, 0.0
      %v504 = vadd.f32 %v502, %v503
      %v505 = vsel %vm263, %v460, 0.0
      %v506 = vadd.f32 %v504, %v505
      %v507 = vsel %vm263, %v461, 0.0
      %v508 = vadd.f32 %v506, %v507
      %v509 = vsel %vm263, %v462, 0.0
      %v510 = vadd.f32 %v508, %v509
      %v511 = vsel %vm263, %v463, 0.0
      %v512 = vadd.f32 %v510, %v511
      %v513 = vsel %vm263, %v464, 0.0
      %v514 = vadd.f32 %v512, %v513
      %v515 = vsel %vm263, %v465, 0.0
      %v516 = vadd.f32 %v514, %v515
      %v517 = vsel %vm263, %v466, 0.0
      %v518 = vadd.f32 %v516, %v517
      %v519 = vsel %vm263, %v467, 0.0
      %v520 = vadd.f32 %v518, %v519
      %v521 = vsel %vm263, %v468, 0.0
      %v522 = vadd.f32 %v520, %v521
      %v523 = vsel %vm263, %v469, 0.0
      %v524 = vadd.f32 %v522, %v523
      %v525 = vsel %vm263, %v470, 0.0
      %v526 = vadd.f32 %v524, %v525
      %v527 = vsel %vm263, %v471, 0.0
      %v528 = vadd.f32 %v526, %v527
      %v529 = vsel %vm263, %v472, 0.0
      %v530 = vadd.f32 %v528, %v529
      %v531 = vsel %vm263, %v473, 0.0
      %v532 = vadd.f32 %v530, %v531
      %v533 = vsel %vm263, %v474, 0.0
      %v534 = vadd.f32 %v532, %v533
      %v535 = vsel %vm263, %v475, 0.0
      %v536 = vadd.f32 %v534, %v535
      %v537 = vsel %vm263, %v476, 0.0
      %v538 = vadd.f32 %v536, %v537
      %v539 = vsel %vm263, %v477, 0.0
      %v540 = vadd.f32 %v538, %v539
      %v541 = vrot.slane %v540, 4
      %v542 = vadd.f32 %v540, %v541
      %v543 = vrot.slane %v542, 2
      %v544 = vadd.f32 %v542, %v543
      %v545 = vrot.slane %v544, 1
      %v546 = vadd.f32 %v544, %v545
      %v548 = vsel %vm263, %v546, 0
      %550 = vmatprep.subr.mxu0 0.0
      %551 = vmatpush1.msra.mxu0 0.0
      %552 = vmatprep.subr.mxu0 0.0
      %553 = vmatpush1.msra.mxu0 0.0
      %554 = vmatprep.subr.mxu0 0.0
      %555 = vmatpush1.msra.mxu0 0.0
      %556 = vmatprep.subr.mxu0 0.0
      %557 = vmatpush1.msra.mxu0 0.0
      %558 = vmatprep.subr.mxu0 0.0
      %559 = vmatpush1.msra.mxu0 0.0
      %560 = vmatprep.subr.mxu0 0.0
      %561 = vmatpush1.msra.mxu0 0.0
      %562 = vmatprep.subr.mxu0 0.0
      %563 = vmatpush1.msra.mxu0 0.0
      %564 = vmatprep.subr.mxu0 0.0
      %565 = vmatpush1.msra.mxu0 0.0
      %566 = vmatprep.subr.mxu0 0.0
      %567 = vmatpush1.msra.mxu0 0.0
      %568 = vmatprep.subr.mxu0 0.0
      %569 = vmatpush1.msra.mxu0 0.0
      %570 = vmatprep.subr.mxu0 0.0
      %571 = vmatpush1.msra.mxu0 0.0
      %572 = vmatprep.subr.mxu0 0.0
      %573 = vmatpush1.msra.mxu0 0.0
      %574 = vmatprep.subr.mxu0 0.0
      %575 = vmatpush1.msra.mxu0 0.0
      %576 = vmatprep.subr.mxu0 0.0
      %577 = vmatpush1.msra.mxu0 0.0
      %578 = vmatprep.subr.mxu0 0.0
      %579 = vmatpush1.msra.mxu0 0.0
      %580 = vmatprep.subr.mxu0 0.0
      %581 = vmatpush1.msra.mxu0 %v338
      %582 = vmatprep.subr.mxu0 0.0
      %583 = vmatpush2.msra.mxu0 0.0
      %584 = vmatprep.subr.mxu0 0.0
      %585 = vmatpush2.msra.mxu0 0.0
      %586 = vmatprep.subr.mxu0 0.0
      %587 = vmatpush2.msra.mxu0 0.0
      %588 = vmatprep.subr.mxu0 0.0
      %589 = vmatpush2.msra.mxu0 0.0
      %590 = vmatprep.subr.mxu0 0.0
      %591 = vmatpush2.msra.mxu0 0.0
      %592 = vmatprep.subr.mxu0 0.0
      %593 = vmatpush2.msra.mxu0 0.0
      %594 = vmatprep.subr.mxu0 0.0
      %595 = vmatpush2.msra.mxu0 0.0
      %596 = vmatprep.subr.mxu0 0.0
      %597 = vmatpush2.msra.mxu0 0.0
      %598 = vmatprep.subr.mxu0 0.0
      %599 = vmatpush2.msra.mxu0 0.0
      %600 = vmatprep.subr.mxu0 0.0
      %601 = vmatpush2.msra.mxu0 0.0
      %602 = vmatprep.subr.mxu0 0.0
      %603 = vmatpush2.msra.mxu0 0.0
      %604 = vmatprep.subr.mxu0 0.0
      %605 = vmatpush2.msra.mxu0 0.0
      %606 = vmatprep.subr.mxu0 0.0
      %607 = vmatpush2.msra.mxu0 0.0
      %608 = vmatprep.subr.mxu0 0.0
      %609 = vmatpush2.msra.mxu0 0.0
      %610 = vmatprep.subr.mxu0 0.0
      %611 = vmatpush2.msra.mxu0 0.0
      %612 = vmatprep.subr.mxu0 0.0
      %613 = vmatpush2.msra.mxu0 0.0
      %614 = vmatprep.mubr.f32.mxu0 0.0
      %615 = vmatmul.mubr.f32.gmra.mxu0 %v548
      %v616 = vpop.f32.mrf.mxu0
      %v617 = vadd.f32 1e-05, %v616
      %v618 = vpop.f32.mrf.mxu0
      %619 = vdwg.mxu0
      %v620 = vrsqrt.pop %v617
      %v621 = vlaneseq
      %v622 = vshrl.u32 %v621, 7
      %v623 = vsub.s32 0, %v622
      %v624 = vrot.slane %v620, %v623
      %v625 = vmul.f32 %v414, %v624
      %v626 = vmul.f32 %v415, %v624
      %v627 = vmul.f32 %v416, %v624
      %v628 = vmul.f32 %v417, %v624
      %v629 = vmul.f32 %v418, %v624
      %v630 = vmul.f32 %v419, %v624
      %v631 = vmul.f32 %v420, %v624
      %v632 = vmul.f32 %v421, %v624
      %v633 = vmul.f32 %v422, %v624
      %v634 = vmul.f32 %v423, %v624
      %v635 = vmul.f32 %v424, %v624
      %v636 = vmul.f32 %v425, %v624
      %v637 = vmul.f32 %v426, %v624
      %v638 = vmul.f32 %v427, %v624
      %v639 = vmul.f32 %v428, %v624
      %v640 = vmul.f32 %v429, %v624
      %v641 = vmul.f32 %v430, %v624
      %v642 = vmul.f32 %v431, %v624
      %v643 = vmul.f32 %v432, %v624
      %v644 = vmul.f32 %v433, %v624
      %v645 = vmul.f32 %v434, %v624
      %v646 = vmul.f32 %v435, %v624
      %v647 = vmul.f32 %v436, %v624
      %v648 = vmul.f32 %v437, %v624
      %v649 = vmul.f32 %v438, %v624
      %v650 = vmul.f32 %v439, %v624
      %v651 = vmul.f32 %v440, %v624
      %v652 = vmul.f32 %v441, %v624
      %v653 = vmul.f32 %v442, %v624
      %v654 = vmul.f32 %v443, %v624
      %v655 = vmul.f32 %v444, %v624
      %v656 = vmul.f32 %v445, %v624
      %v657 = vld [vmem:[%s2] sm:$0x1]
      %v659 = vlaneseq
      %v660 = vshrl.u32 %v659, 7
      %v661 = vsub.s32 0, %v660
      %v662 = vrot.slane %v657, %v661
      %v664 = vmul.f32 %v625, %v662
      %v665 = vmul.f32 %v626, %v662
      %v666 = vmul.f32 %v627, %v662
      %v667 = vmul.f32 %v628, %v662
      %v668 = vmul.f32 %v629, %v662
      %v669 = vmul.f32 %v630, %v662
      %v670 = vmul.f32 %v631, %v662
      %v671 = vmul.f32 %v632, %v662
      %v672 = vmul.f32 %v633, %v662
      %v673 = vmul.f32 %v634, %v662
      %v674 = vmul.f32 %v635, %v662
      %v675 = vmul.f32 %v636, %v662
      %v676 = vmul.f32 %v637, %v662
      %v677 = vmul.f32 %v638, %v662
      %v678 = vmul.f32 %v639, %v662
      %v679 = vmul.f32 %v640, %v662
      %v680 = vmul.f32 %v641, %v662
      %v681 = vmul.f32 %v642, %v662
      %v682 = vmul.f32 %v643, %v662
      %v683 = vmul.f32 %v644, %v662
      %v684 = vmul.f32 %v645, %v662
      %v685 = vmul.f32 %v646, %v662
      %v686 = vmul.f32 %v647, %v662
      %v687 = vmul.f32 %v648, %v662
      %v688 = vmul.f32 %v649, %v662
      %v689 = vmul.f32 %v650, %v662
      %v690 = vmul.f32 %v651, %v662
      %v691 = vmul.f32 %v652, %v662
      %v692 = vmul.f32 %v653, %v662
      %v693 = vmul.f32 %v654, %v662
      %v694 = vmul.f32 %v655, %v662
      %v695 = vmul.f32 %v656, %v662
      %v696 = vld [vmem:[%s3] sm:$0x1]
      %v698 = vlaneseq
      %v699 = vshrl.u32 %v698, 7
      %v700 = vsub.s32 0, %v699
      %v701 = vrot.slane %v696, %v700
      %v703 = vadd.f32 %v664, %v701
      %v704 = vadd.f32 %v665, %v701
      %v705 = vadd.f32 %v666, %v701
      %v706 = vadd.f32 %v667, %v701
      %v707 = vadd.f32 %v668, %v701
      %v708 = vadd.f32 %v669, %v701
      %v709 = vadd.f32 %v670, %v701
      %v710 = vadd.f32 %v671, %v701
      %v711 = vadd.f32 %v672, %v701
      %v712 = vadd.f32 %v673, %v701
      %v713 = vadd.f32 %v674, %v701
      %v714 = vadd.f32 %v675, %v701
      %v715 = vadd.f32 %v676, %v701
      %v716 = vadd.f32 %v677, %v701
      %v717 = vadd.f32 %v678, %v701
      %v718 = vadd.f32 %v679, %v701
      %v719 = vadd.f32 %v680, %v701
      %v720 = vadd.f32 %v681, %v701
      %v721 = vadd.f32 %v682, %v701
      %v722 = vadd.f32 %v683, %v701
      %v723 = vadd.f32 %v684, %v701
      %v724 = vadd.f32 %v685, %v701
      %v725 = vadd.f32 %v686, %v701
      %v726 = vadd.f32 %v687, %v701
      %v727 = vadd.f32 %v688, %v701
      %v728 = vadd.f32 %v689, %v701
      %v729 = vadd.f32 %v690, %v701
      %v730 = vadd.f32 %v691, %v701
      %v731 = vadd.f32 %v692, %v701
      %v732 = vadd.f32 %v693, %v701
      %v733 = vadd.f32 %v694, %v701
      %v734 = vadd.f32 %v695, %v701
      %v735 = vmax.f32 %v703, 0.0
      %v736 = vmax.f32 %v704, 0.0
      %v737 = vmax.f32 %v705, 0.0
      %v738 = vmax.f32 %v706, 0.0
      %v739 = vmax.f32 %v707, 0.0
      %v740 = vmax.f32 %v708, 0.0
      %v741 = vmax.f32 %v709, 0.0
      %v742 = vmax.f32 %v710, 0.0
      %v743 = vmax.f32 %v711, 0.0
      %v744 = vmax.f32 %v712, 0.0
      %v745 = vmax.f32 %v713, 0.0
      %v746 = vmax.f32 %v714, 0.0
      %v747 = vmax.f32 %v715, 0.0
      %v748 = vmax.f32 %v716, 0.0
      %v749 = vmax.f32 %v717, 0.0
      %v750 = vmax.f32 %v718, 0.0
      %v751 = vmax.f32 %v719, 0.0
      %v752 = vmax.f32 %v720, 0.0
      %v753 = vmax.f32 %v721, 0.0
      %v754 = vmax.f32 %v722, 0.0
      %v755 = vmax.f32 %v723, 0.0
      %v756 = vmax.f32 %v724, 0.0
      %v757 = vmax.f32 %v725, 0.0
      %v758 = vmax.f32 %v726, 0.0
      %v759 = vmax.f32 %v727, 0.0
      %v760 = vmax.f32 %v728, 0.0
      %v761 = vmax.f32 %v729, 0.0
      %v762 = vmax.f32 %v730, 0.0
      %v763 = vmax.f32 %v731, 0.0
      %v764 = vmax.f32 %v732, 0.0
      %v765 = vmax.f32 %v733, 0.0
      %v766 = vmax.f32 %v734, 0.0
      %v767 = vpack.c.bf16 %v736, %v735
      %v768 = vpack.c.bf16 %v738, %v737
      %v769 = vpack.c.bf16 %v740, %v739
      %v770 = vpack.c.bf16 %v742, %v741
      %v771 = vpack.c.bf16 %v744, %v743
      %v772 = vpack.c.bf16 %v746, %v745
      %v773 = vpack.c.bf16 %v748, %v747
      %v774 = vpack.c.bf16 %v750, %v749
      %v775 = vpack.c.bf16 %v752, %v751
      %v776 = vpack.c.bf16 %v754, %v753
      %v777 = vpack.c.bf16 %v756, %v755
      %v778 = vpack.c.bf16 %v758, %v757
      %v779 = vpack.c.bf16 %v760, %v759
      %v780 = vpack.c.bf16 %v762, %v761
      %v781 = vpack.c.bf16 %v764, %v763
      %v782 = vpack.c.bf16 %v766, %v765
      %v799 = vunpack.c.l.b16 %v767
      %v800 = vunpack.c.h.b16 %v767
      %v801 = vunpack.c.l.b16 %v768
      %v802 = vunpack.c.h.b16 %v768
      %v803 = vunpack.c.l.b16 %v769
      %v804 = vunpack.c.h.b16 %v769
      %v805 = vunpack.c.l.b16 %v770
      %v806 = vunpack.c.h.b16 %v770
      %v807 = vunpack.c.l.b16 %v771
      %v808 = vunpack.c.h.b16 %v771
      %v809 = vunpack.c.l.b16 %v772
      %v810 = vunpack.c.h.b16 %v772
      %v811 = vunpack.c.l.b16 %v773
      %v812 = vunpack.c.h.b16 %v773
      %v813 = vunpack.c.l.b16 %v774
      %v814 = vunpack.c.h.b16 %v774
      %v815 = vunpack.c.l.b16 %v775
      %v816 = vunpack.c.h.b16 %v775
      %v817 = vunpack.c.l.b16 %v776
      %v818 = vunpack.c.h.b16 %v776
      %v819 = vunpack.c.l.b16 %v777
      %v820 = vunpack.c.h.b16 %v777
      %v821 = vunpack.c.l.b16 %v778
      %v822 = vunpack.c.h.b16 %v778
      %v823 = vunpack.c.l.b16 %v779
      %v824 = vunpack.c.h.b16 %v779
      %v825 = vunpack.c.l.b16 %v780
      %v826 = vunpack.c.h.b16 %v780
      %v827 = vunpack.c.l.b16 %v781
      %v828 = vunpack.c.h.b16 %v781
      %v829 = vunpack.c.l.b16 %v782
      %v830 = vunpack.c.h.b16 %v782
      %v831 = vpack.c.b16 %v799, %v799
      %v832 = vpack.c.b16 %v800, %v800
      %v833 = vpack.c.b16 %v801, %v801
      %v834 = vpack.c.b16 %v802, %v802
      %v835 = vpack.c.b16 %v803, %v803
      %v836 = vpack.c.b16 %v804, %v804
      %v837 = vpack.c.b16 %v805, %v805
      %v838 = vpack.c.b16 %v806, %v806
      %v839 = vpack.c.b16 %v807, %v807
      %v840 = vpack.c.b16 %v808, %v808
      %v841 = vpack.c.b16 %v809, %v809
      %v842 = vpack.c.b16 %v810, %v810
      %v843 = vpack.c.b16 %v811, %v811
      %v844 = vpack.c.b16 %v812, %v812
      %v845 = vpack.c.b16 %v813, %v813
      %v846 = vpack.c.b16 %v814, %v814
      %v847 = vpack.c.b16 %v815, %v815
      %v848 = vpack.c.b16 %v816, %v816
      %v849 = vpack.c.b16 %v817, %v817
      %v850 = vpack.c.b16 %v818, %v818
      %v851 = vpack.c.b16 %v819, %v819
      %v852 = vpack.c.b16 %v820, %v820
      %v853 = vpack.c.b16 %v821, %v821
      %v854 = vpack.c.b16 %v822, %v822
      %v855 = vpack.c.b16 %v823, %v823
      %v856 = vpack.c.b16 %v824, %v824
      %v857 = vpack.c.b16 %v825, %v825
      %v858 = vpack.c.b16 %v826, %v826
      %v859 = vpack.c.b16 %v827, %v827
      %v860 = vpack.c.b16 %v828, %v828
      %v861 = vpack.c.b16 %v829, %v829
      %v862 = vpack.c.b16 %v830, %v830
      %vm895 = vcmask 27648
      %896 = vst.msk [vmem:[%s197] sm:$0xf] %vm895, %v831
      %897 = vst.msk [vmem:[%s197 + $0x4] sm:$0xf] %vm895, %v832
      %898 = vst.msk [vmem:[%s197 + $0x8] sm:$0xf] %vm895, %v833
      %899 = vst.msk [vmem:[%s197 + $0xc] sm:$0xf] %vm895, %v834
      %900 = vst.msk [vmem:[%s197 + $0x10] sm:$0xf] %vm895, %v835
      %901 = vst.msk [vmem:[%s197 + $0x14] sm:$0xf] %vm895, %v836
      %902 = vst.msk [vmem:[%s197 + $0x18] sm:$0xf] %vm895, %v837
      %903 = vst.msk [vmem:[%s197 + $0x1c] sm:$0xf] %vm895, %v838
      %904 = vst.msk [vmem:[%s197 + $0x20] sm:$0xf] %vm895, %v839
      %905 = vst.msk [vmem:[%s197 + $0x24] sm:$0xf] %vm895, %v840
      %906 = vst.msk [vmem:[%s197 + $0x28] sm:$0xf] %vm895, %v841
      %907 = vst.msk [vmem:[%s197 + $0x2c] sm:$0xf] %vm895, %v842
      %908 = vst.msk [vmem:[%s197 + $0x30] sm:$0xf] %vm895, %v843
      %909 = vst.msk [vmem:[%s197 + $0x34] sm:$0xf] %vm895, %v844
      %910 = vst.msk [vmem:[%s197 + $0x38] sm:$0xf] %vm895, %v845
      %911 = vst.msk [vmem:[%s197 + $0x3c] sm:$0xf] %vm895, %v846
      %912 = vst.msk [vmem:[%s197 + $0x40] sm:$0xf] %vm895, %v847
      %913 = vst.msk [vmem:[%s197 + $0x44] sm:$0xf] %vm895, %v848
      %914 = vst.msk [vmem:[%s197 + $0x48] sm:$0xf] %vm895, %v849
      %915 = vst.msk [vmem:[%s197 + $0x4c] sm:$0xf] %vm895, %v850
      %916 = vst.msk [vmem:[%s197 + $0x50] sm:$0xf] %vm895, %v851
      %917 = vst.msk [vmem:[%s197 + $0x54] sm:$0xf] %vm895, %v852
      %918 = vst.msk [vmem:[%s197 + $0x58] sm:$0xf] %vm895, %v853
      %919 = vst.msk [vmem:[%s197 + $0x5c] sm:$0xf] %vm895, %v854
      %920 = vst.msk [vmem:[%s197 + $0x60] sm:$0xf] %vm895, %v855
      %921 = vst.msk [vmem:[%s197 + $0x64] sm:$0xf] %vm895, %v856
      %922 = vst.msk [vmem:[%s197 + $0x68] sm:$0xf] %vm895, %v857
      %923 = vst.msk [vmem:[%s197 + $0x6c] sm:$0xf] %vm895, %v858
      %924 = vst.msk [vmem:[%s197 + $0x70] sm:$0xf] %vm895, %v859
      %925 = vst.msk [vmem:[%s197 + $0x74] sm:$0xf] %vm895, %v860
      %926 = vst.msk [vmem:[%s197 + $0x78] sm:$0xf] %vm895, %v861
      %927 = vst.msk [vmem:[%s197 + $0x7c] sm:$0xf] %vm895, %v862
      %p928 = scmp.lt.s32.totalorder %s15, 1
      %s929 = scalar_select %p928, %s15, 1
      %s930 = smul.addr %s929, 32
      %s931 = smul.addr %s930, 4
      %s932 = scalar_lea.vmem %s4, %s931
      // Predicated region
      $region37: #{tpu_custom_call.1} parent=35 // pred_check
        %p933 = pneg %p122
      $region38: #{tpu_custom_call.1} parent=35 // pred_check_branch
        %935 = sbr.rel (%p933) target = $region40
      $region39: #{tpu_custom_call.1} parent=35 // pred_region
        _
      $region40: #{tpu_custom_call.1} parent=35 // pred_fallthru
        _
    $region36: #{tpu_custom_call.1} parent=5 // pred_fallthru
      _
    %p936 = scmp.le.s32.totalorder 2, %s10
    // Predicated region
    $region41: #{tpu_custom_call.1} parent=5 // pred_check
      %p937 = pneg %p936
    $region42: #{tpu_custom_call.1} parent=5 // pred_check_branch
      %939 = sbr.rel (%p937) target = $region44
    $region43: #{tpu_custom_call.1} parent=5 // pred_region
      %s940 = ssub.s32 %s10, 2
      // Predicated region
      $region45: #{tpu_custom_call.1} parent=43 // pred_check
        %p941 = pneg %p128
      $region46: #{tpu_custom_call.1} parent=43 // pred_check_branch
        %943 = sbr.rel (%p941) target = $region48
      $region47: #{tpu_custom_call.1} parent=43 // pred_region
        %p944 = scmp.lt.s32.totalorder %s16, 1
        %s945 = scalar_select %p944, %s16, 1
        %s946 = smul.addr %s945, 32
        %s947 = smul.addr %s946, 4
        %s948 = scalar_lea.vmem %s4, %s947
      $region48: #{tpu_custom_call.1} parent=43 // pred_fallthru
        _
    $region44: #{tpu_custom_call.1} parent=5 // pred_fallthru
      _
  $region6: #{tpu_custom_call.1} parent=0 // loop_footer
    %s14 = sadd.s32 1, %s10
  $region7: #{tpu_custom_call.1} parent=0 // loop_footer_branch
    %9 = sbr.rel target = $region3
  $region8: #{tpu_custom_call.1} parent=0 // loop_exit
    _

</llo_original>
